<compile_context>
chip_gen: v5e
topology: v5e:2x2
jax: 0.10.0
libtpu: 0.0.40
codegen_flags: <defaults>
</compile_context>

<pallas_src>
import functools
import math

import jax
import jax.numpy as jnp
from jax import lax
from jax.experimental import pallas as pl
from jax.experimental.pallas import tpu as pltpu


def _round_up(x, m):
    return ((x + m - 1) // m) * m


# Tiling / budget knobs, chosen to be safe on v5e / v6e / v7x simultaneously:
# an 8 MiB weight tile double-buffered (16 MiB) + small x/out blocks stays well
# inside the 32 MiB scoped-VMEM limit requested below, which itself leaves
# headroom on v7x's 64 MiB physical VMEM.  (On v5e/v6e with 128 MiB physical
# this could be raised to 16 MiB tiles / 48 MiB limit for another ~10%.)
_BLOCK_CAP_BYTES = 8 * 1024 * 1024
_VMEM_LIMIT_BYTES = 32 * 1024 * 1024
# Banks up to this size are kept fully resident in VMEM (review option (b)).
_RESIDENT_BANK_BYTES = 4 * 1024 * 1024
# Row-scatter DMAs kept in flight in the memory-update kernel.
_SCATTER_DMA_SLOTS = 8
# MXU q-tile for the gathered-weight path; >= 8 keeps the lhs sublane-aligned
# (rows 1..7 are zero padding, the extra MXU flops are free under the HBM
# roofline).
_QPAD = 8


# ----------------------------- Kernel 1: scores -----------------------------

def _resident_scores_kernel(mem_ref, x_ref, o_ref, *, inv_T, apply_exp):
    # mem_ref: (N, D) whole bank, resident across grid steps (constant
    # index_map -> Pallas DMAs it from HBM exactly once).
    # x_ref: (BT, D), o_ref: (BT, N).
    s = jnp.einsum("bd,nd->bn", x_ref[...], mem_ref[...],
                   preferred_element_type=jnp.float32) * inv_T        # MXU
    if apply_exp:
        s = jnp.exp(s)                                                # EUP
    o_ref[...] = s.astype(o_ref.dtype)


def _gather_scores_kernel(w_ref, x_ref, o_ref, *, inv_T, apply_exp):
    # w_ref: (BT, KT, D) pre-gathered rows, x_ref: (BT, QPAD, D) (row 0 = x[b]),
    # o_ref: (BT, KT).  Batched MXU matmul keeps the D-contraction off the XLU
    # (the binding VLIW slot on v6e/v7x per the review); output stays
    # lane-dense (KT multiple of 128).
    s3 = jnp.einsum("bqd,bkd->bqk", x_ref[...], w_ref[...],
                    preferred_element_type=jnp.float32)
    s = s3[:, 0, :] * inv_T
    if apply_exp:
        s = jnp.exp(s)
    o_ref[...] = s.astype(o_ref.dtype)


def _nce_scores_resident(memory, x, idx, *, inv_T, apply_exp):
    B, Kp1 = idx.shape
    N, D = memory.shape
    # Batch tile: keep the (BT, N) output block around 2 MiB, fill sublanes.
    BT = min(128, max(8, ((2 * 1024 * 1024) // (N * 4)) // 8 * 8))
    BT = min(BT, _round_up(B, 8))
    Bpad = _round_up(B, BT)
    x_p = jnp.zeros((Bpad, D), jnp.float32).at[:B].set(x)

    kernel = functools.partial(_resident_scores_kernel, inv_T=inv_T,
                               apply_exp=apply_exp)
    scores = pl.pallas_call(
        kernel,
        grid=(Bpad // BT,),
        in_specs=[
            pl.BlockSpec((N, D), lambda i: (0, 0)),     # bank: fetched once
            pl.BlockSpec((BT, D), lambda i: (i, 0)),
        ],
        out_specs=pl.BlockSpec((BT, N), lambda i: (i, 0)),
        out_shape=jax.ShapeDtypeStruct((Bpad, N), jnp.float32),
        compiler_params=pltpu.CompilerParams(
            dimension_semantics=("parallel",),
            vmem_limit_bytes=_VMEM_LIMIT_BYTES),
        cost_estimate=pl.CostEstimate(
            flops=2 * Bpad * N * D,
            transcendentals=Bpad * N if apply_exp else 0,
            bytes_accessed=(N * D + Bpad * D + Bpad * N) * 4),
    )(memory, x_p)
    # Tiny (B, K+1) pick on the small score matrix; exp is pointwise & monotone
    # so gathering after exp == exp after gathering.
    return jnp.take_along_axis(scores[:B], idx, axis=1)


def _pick_kt(kpad, kt_cap):
    # Largest multiple of 128 that divides kpad and fits the tile cap.
    for kt in range(min(kt_cap, kpad), 0, -128):
        if kpad % kt == 0:
            return kt
    return 128


def _nce_scores_gather(memory, x, idx, *, inv_T, apply_exp):
    B, Kp1 = idx.shape
    N, D = memory.shape

    BT = 8 if B <= 8 else 16
    while BT > 8 and BT * 128 * D * 4 > _BLOCK_CAP_BYTES:
        BT //= 2
    Bpad = _round_up(B, BT)
    # K padded only to the next multiple of 128 (<=127 wasted columns instead
    # of <=KT-1), KT chosen as a divisor of Kpad.
    Kpad = _round_up(Kp1, 128)
    kt_cap = max(128, (_BLOCK_CAP_BYTES // (BT * D * 4)) // 128 * 128)
    KT = _pick_kt(Kpad, kt_cap)

    idx_p = jnp.zeros((Bpad, Kpad), jnp.int32).at[:B, :Kp1].set(idx)
    x_q = jnp.zeros((Bpad, _QPAD, D), jnp.float32).at[:B, 0, :].set(x)
    # One batched XLA row gather.
    # TODO(synk): this still materializes (Bpad, Kpad, D) in HBM and re-reads
    # it (~2-3x minimum traffic); for banks that do not fit VMEM the remaining
    # fix is an in-kernel DMA gather from an ANY-space bank ref (or
    # allow_input_fusion), not done here.
    w = jnp.take(memory, idx_p.reshape(-1), axis=0).reshape(Bpad, Kpad, D)

    kernel = functools.partial(_gather_scores_kernel, inv_T=inv_T,
                               apply_exp=apply_exp)
    out = pl.pallas_call(
        kernel,
        grid=(Bpad // BT, Kpad // KT),
        in_specs=[
            pl.BlockSpec((BT, KT, D), lambda i, j: (i, j, 0)),
            pl.BlockSpec((BT, _QPAD, D), lambda i, j: (i, 0, 0)),
        ],
        out_specs=pl.BlockSpec((BT, KT), lambda i, j: (i, j)),
        out_shape=jax.ShapeDtypeStruct((Bpad, Kpad), jnp.float32),
        compiler_params=pltpu.CompilerParams(
            dimension_semantics=("parallel", "parallel"),
            vmem_limit_bytes=_VMEM_LIMIT_BYTES),
        cost_estimate=pl.CostEstimate(
            flops=2 * Bpad * Kpad * D * _QPAD,
            transcendentals=Bpad * Kpad if apply_exp else 0,
            bytes_accessed=(Bpad * Kpad * D + Bpad * _QPAD * D
                            + Bpad * Kpad) * 4),
    )(w, x_q)
    return out[:B, :Kp1]


def nce_scores(memory, x, idx, *, T, use_softmax, force_gather_path=False):
    memory = memory.astype(jnp.float32)
    x = x.astype(jnp.float32)
    N, D = memory.shape
    inv_T = float(1.0 / T)
    apply_exp = not use_softmax
    if (not force_gather_path) and N * D * 4 <= _RESIDENT_BANK_BYTES:
        return _nce_scores_resident(memory, x, idx, inv_T=inv_T,
                                    apply_exp=apply_exp)
    return _nce_scores_gather(memory, x, idx, inv_T=inv_T, apply_exp=apply_exp)


# ------------------- Kernel 2: in-place memory-bank update -------------------

def _memory_update_kernel(y_ref, mem_in_ref, rows_ref, x_ref, mem_out_ref,
                          p_ref, sem, *, n_rows, n_slots, momentum):
    del mem_in_ref  # aliased with mem_out_ref; present only for the aliasing.
    # (1) Batched momentum mix + L2 normalization for all rows at once
    #     (full 8-sublane vreg occupancy, rsqrt on the EUP slot).
    p = rows_ref[...] * momentum + x_ref[...] * (1.0 - momentum)
    p_ref[...] = p * lax.rsqrt(jnp.sum(p * p, axis=-1, keepdims=True))

    # (2) Hand-rolled in-place scatter: one row DMA per sample, n_slots DMAs
    #     kept in flight (replaces the old grid=(B,) per-row pipeline and its
    #     ~0.35us + 3 tiny DMAs of overhead per row).
    @pl.loop(0, n_rows)
    def _(b):
        slot = b & (n_slots - 1)

        @pl.when(b >= n_slots)
        def _():
            pltpu.make_async_copy(p_ref.at[b - n_slots],
                                  mem_out_ref.at[y_ref[b - n_slots]],
                                  sem.at[slot]).wait()

        pltpu.make_async_copy(p_ref.at[b], mem_out_ref.at[y_ref[b]],
                              sem.at[slot]).start()

    tail = min(n_rows, n_slots)

    @pl.loop(n_rows - tail, n_rows)
    def _(b):
        slot = b & (n_slots - 1)
        pltpu.make_async_copy(p_ref.at[b], mem_out_ref.at[y_ref[b]],
                              sem.at[slot]).wait()


def memory_update_inplace(memory, mem_rows, x_rows, y, *, momentum):
    """Writes the momentum-updated, L2-normalized rows back into `memory` at
    rows `y` in place (output aliases the memory input; untouched rows never
    move through HBM).  Duplicate y: last-writer-wins, unspecified order (same
    caveat as torch.index_copy_)."""
    N, D = memory.shape
    B = int(y.shape[0])
    Bp = x_rows.shape[0]
    n_slots = _SCATTER_DMA_SLOTS
    kernel = functools.partial(_memory_update_kernel, n_rows=B,
                               n_slots=n_slots, momentum=float(momentum))
    grid_spec = pltpu.PrefetchScalarGridSpec(
        num_scalar_prefetch=1,          # y -> SMEM
        grid=(1,),
        in_specs=[
            pl.BlockSpec(memory_space=pl.ANY),                 # bank (aliased)
            pl.BlockSpec((Bp, D), lambda i, y_ref: (0, 0)),    # memory[y] rows
            pl.BlockSpec((Bp, D), lambda i, y_ref: (0, 0)),    # x rows
        ],
        out_specs=pl.BlockSpec(memory_space=pl.ANY),           # aliased bank
        scratch_shapes=[pltpu.VMEM((Bp, D), jnp.float32),
                        pltpu.SemaphoreType.DMA((n_slots,))],
    )
    return pl.pallas_call(
        kernel,
        grid_spec=grid_spec,
        out_shape=jax.ShapeDtypeStruct((N, D), jnp.float32),
        # memory is input index 1 (after the scalar-prefetch y); alias it to
        # output 0 so only the touched rows are written.
        input_output_aliases={1: 0},
        compiler_params=pltpu.CompilerParams(
            dimension_semantics=("arbitrary",),
            has_side_effects=True),
        cost_estimate=pl.CostEstimate(
            flops=4 * Bp * D, transcendentals=Bp,
            bytes_accessed=3 * Bp * D * 4),
    )(y, memory, mem_rows, x_rows)


# ----------------------------- Fused forward core -----------------------------

@functools.partial(jax.jit,
                   static_argnames=("T", "momentum", "use_softmax"),
                   donate_argnums=(0,))
def _forward_core(memory, x, y, idx, *, T, momentum, use_softmax):
    x = x.astype(jnp.float32)
    B, D = x.shape
    out = nce_scores(memory, x, idx, T=T, use_softmax=use_softmax)

    # Batched gather of the pre-update rows for the momentum mix.
    Bp = _round_up(B, 8)
    y_pad = jnp.zeros((Bp,), jnp.int32).at[:B].set(y)
    mem_rows = jnp.take(memory, y_pad, axis=0)
    x_pad = jnp.zeros((Bp, D), jnp.float32).at[:B].set(x)

    # Data-dependency barrier: orders every read of `memory` (score path and
    # the row gather above) before the in-place scatter so XLA does not insert
    # a defensive full-bank copy.
    out_b, mem_rows_b, x_pad_b = lax.optimization_barrier(
        (out, mem_rows, x_pad))
    new_memory = memory_update_inplace(memory, mem_rows_b, x_pad_b, y,
                                       momentum=momentum)
    return out_b, new_memory


# ------------------------------ Module wrapper -------------------------------

class MemoryInsDis:
    """Memory bank with instance discrimination (JAX / Pallas TPU)."""

    def __init__(self, inputSize, outputSize, K, T=0.07, momentum=0.5,
                 use_softmax=False, seed=0):
        self.nLem = outputSize
        self.K = K
        self.T = float(T)
        self.momentum = float(momentum)
        self.use_softmax = use_softmax
        self.Z = None  # params[2] in torch; device scalar after first forward
        stdv = 1.0 / math.sqrt(inputSize / 3)
        key = jax.random.PRNGKey(seed)
        self.memory = jax.random.uniform(key, (outputSize, inputSize),
                                         jnp.float32, minval=-stdv, maxval=stdv)
        self._draw_key = jax.random.PRNGKey(seed + 1)

    def forward(self, x, y, idx=None):
        B = x.shape[0]
        N, _ = self.memory.shape
        if idx is None:
            # TODO(synk): AliasMethod over uniform unigrams == uniform sampling
            # over [0, N); a true alias-table sampler is not re-implemented.
            self._draw_key, sub = jax.random.split(self._draw_key)
            idx = jax.random.randint(sub, (B, self.K + 1), 0, N, dtype=jnp.int32)
            idx = idx.at[:, 0].set(y)
        idx = idx.astype(jnp.int32)
        y = y.astype(jnp.int32)

        out, new_memory = _forward_core(
            self.memory, x, y, idx,
            T=self.T, momentum=self.momentum, use_softmax=self.use_softmax)
        self.memory = new_memory  # old buffer was donated / updated in place

        if not self.use_softmax:
            if self.Z is None:
                # Device-side normalization constant (torch prints Z here;
                # skipped to keep stdout clean).
                self.Z = jnp.mean(out) * N
            out = out / self.Z
        return out


# ----------------------------------- Main ------------------------------------

if __name__ == "__main__":
    B, D, N, K = 2, 32, 64, 7   # batch, inputSize, outputSize, negatives
    T_, momentum = 0.07, 0.5

    key = jax.random.PRNGKey(0)
    k1, k2, k3 = jax.random.split(key, 3)
    x = jax.random.normal(k1, (B, D), jnp.float32)
    x = x / jnp.linalg.norm(x, axis=1, keepdims=True)
    y = jax.random.permutation(k2, N)[:B].astype(jnp.int32)   # distinct rows
    idx = jax.random.randint(k3, (B, K + 1), 0, N, dtype=jnp.int32)
    idx = idx.at[:, 0].set(y)

    model = MemoryInsDis(inputSize=D, outputSize=N, K=K, T=T_, momentum=momentum)
    mem0 = jnp.copy(model.memory)     # real copy: memory buffer gets donated
    jax.block_until_ready(mem0)

    # Pure-JAX reference for the score path.
    w_ref = mem0[idx.reshape(-1)].reshape(B, K + 1, D)
    exp_ref = jnp.exp(jnp.sum(w_ref * x[:, None, :], axis=-1) / T_)

    # Exercise BOTH score kernels (VMEM-resident bank + gathered-weight path).
    s_res = nce_scores(mem0, x, idx, T=T_, use_softmax=False)
    s_gat = nce_scores(mem0, x, idx, T=T_, use_softmax=False,
                       force_gather_path=True)
    jax.block_until_ready((s_res, s_gat))
    assert s_res.shape == (B, K + 1) and s_gat.shape == (B, K + 1)
    # MXU f32 matmuls may run as bf16 passes; the error is amplified by
    # exp(./T) with T=0.07, so allow ~1e-2 relative slack.
    assert jnp.allclose(s_res, exp_ref, rtol=2e-2, atol=1e-6)
    assert jnp.allclose(s_gat, exp_ref, rtol=2e-2, atol=1e-6)

    # Full forward: scores + Z normalization + in-place memory update.
    out = model.forward(x, y, idx)
    jax.block_until_ready((out, model.memory))
    ref_out = exp_ref / (jnp.mean(exp_ref) * N)
    assert out.shape == (B, K + 1)
    assert jnp.allclose(out, ref_out, rtol=2e-2, atol=1e-6)

    # Reference for the in-place memory update.
    p = mem0[y] * momentum + x * (1.0 - momentum)
    p = p / jnp.sqrt(jnp.sum(p * p, axis=1, keepdims=True))
    assert jnp.allclose(model.memory[y], p, rtol=1e-4, atol=1e-6)

    # Rows not in y must be untouched by the in-place scatter.
    untouched = jnp.ones((N,), bool).at[y].set(False)
    diff = jnp.where(untouched[:, None], model.memory - mem0, 0.0)
    assert jnp.allclose(diff, 0.0, atol=0.0)

    print("KERNEL_OK")
</pallas_src>

<mosaic_0001>
module attributes {stable_mosaic.version = 11 : i64} {
  func.func @_resident_scores_kernel(%arg0: i32, %arg1: memref<64x32xf32, #tpu.memory_space<vmem>>, %arg2: memref<8x32xf32, #tpu.memory_space<vmem>>, %arg3: memref<8x64xf32, #tpu.memory_space<vmem>>) attributes {dimension_semantics = [#tpu.dimension_semantics<parallel>], iteration_bounds = array<i64: 1>, scalar_prefetch = 0 : i64, scratch_operands = 0 : i64, tpu.core_type = #tpu.core_type<tc>, window_params = [{pipeline_mode = #tpu.pipeline_mode<synchronous>, transform_indices = @transform_0, window_bounds = array<i64: 64, 32>}, {transform_indices = @transform_1, window_bounds = array<i64: 8, 32>}, {transform_indices = @transform_2, window_bounds = array<i64: 8, 64>}]} {
    %c0 = arith.constant 0 : index
    %c0_0 = arith.constant 0 : index
    %0 = vector.load %arg2[%c0, %c0_0] : memref<8x32xf32, #tpu.memory_space<vmem>>, vector<8x32xf32>
    %c0_1 = arith.constant 0 : index
    %c0_2 = arith.constant 0 : index
    %1 = vector.load %arg1[%c0_1, %c0_2] : memref<64x32xf32, #tpu.memory_space<vmem>>, vector<64x32xf32>
    "tpu.trace_start"() <{level = 10 : i32, message = "bd,nd->bn"}> : () -> ()
    %cst = arith.constant dense<0.000000e+00> : vector<8x64xf32>
    %2 = tpu.matmul %0, %1, %cst {dimension_numbers = #tpu.dot_dimension_numbers<[1], [1], [0], [0], [0, 0, 1, 0], [], []>} : vector<8x32xf32>, vector<64x32xf32>, vector<8x64xf32> -> vector<8x64xf32>
    "tpu.trace_stop"() : () -> ()
    %cst_3 = arith.constant 14.2857141 : f32
    %3 = vector.broadcast %cst_3 : f32 to vector<8x64xf32>
    %4 = arith.mulf %2, %3 : vector<8x64xf32>
    %5 = math.exp %4 : vector<8x64xf32>
    %c0_4 = arith.constant 0 : index
    %c0_5 = arith.constant 0 : index
    %6 = vector.load %arg3[%c0_4, %c0_5] : memref<8x64xf32, #tpu.memory_space<vmem>>, vector<8x64xf32>
    tpu.vector_store %arg3[%c0_4, %c0_5], %5 {strides = array<i32>} : memref<8x64xf32, #tpu.memory_space<vmem>>, vector<8x64xf32>,
    return
  }
  func.func @transform_0(%arg0: i32) -> (i32, i32) {
    %c0_i32 = arith.constant 0 : i32
    %c0_i32_0 = arith.constant 0 : i32
    %c0_i32_1 = arith.constant 0 : i32
    return %c0_i32, %c0_i32_0 : i32, i32
  }
  func.func @transform_1(%arg0: i32) -> (i32, i32) {
    %c0_i32 = arith.constant 0 : i32
    %c0_i32_0 = arith.constant 0 : i32
    return %arg0, %c0_i32 : i32, i32
  }
  func.func @transform_2(%arg0: i32) -> (i32, i32) {
    %c0_i32 = arith.constant 0 : i32
    %c0_i32_0 = arith.constant 0 : i32
    return %arg0, %c0_i32 : i32, i32
  }
}

</mosaic_0001>

<llo_original>
// kernel: tpu_custom_call.1
$region0: #{tpu_custom_call.1}
  #allocation0 [shape = 'u32[]', space=smem, size = 0x4, offset = 0x4, fixed_abs, tag = 'smem constant byte address 0x4 - core index']
  #allocation1 [shape = 'u32[72,128]{1,0:T(1,128)}', space=vmem, size = 0x9000, scoped, tag = 'internal scratch']
  %s0 = inlined_call_operand.vmem [shape: f32[64,32], index: 0, kind: input, shape index: {}]
  %s1 = inlined_call_operand.vmem [shape: f32[8,32], index: 1, kind: input, shape index: {}]
  %s2 = inlined_call_operand.hbm [shape: f32[8,64], index: 2, kind: output, shape index: {}]
  %s3 = sld [smem:[#allocation0]]
  $region18: #{tpu_custom_call.1} parent=0
    _
  %s5 = ssub.s32 1, %s3
  %s6 = scalar_select 0, %s5, %s3
  $region1: #{tpu_custom_call.1} parent=0
    #allocation2 [shape = 'u8[4096]{0}', space=vmem, size = 0x1000, scoped, tag = 'output window, operand 0, single buffered']
    #allocation3 [shape = 's32[1]{0}', space=sflag, size = 0x4, scoped, tag = 'scoped memory for tpu_custom_call.1']
    %7 = vsyncpa [#allocation3], 0
    // Predicated region
    $region2: #{tpu_custom_call.1} parent=1 // pred_check
      _
    $region3: #{tpu_custom_call.1} parent=1 // pred_check_branch
      %9 = sbr.rel (0) target = $region5
    $region4: #{tpu_custom_call.1} parent=1 // pred_region
      _
    $region5: #{tpu_custom_call.1} parent=1 // pred_fallthru
      _
    // Predicated region
    $region6: #{tpu_custom_call.1} parent=1 // pred_check
      _
    $region7: #{tpu_custom_call.1} parent=1 // pred_check_branch
      %11 = sbr.rel (0) target = $region9
    $region8: #{tpu_custom_call.1} parent=1 // pred_region
      _
    $region9: #{tpu_custom_call.1} parent=1 // pred_fallthru
      _
    %v12 = vld [vmem:[%s1] sm:$0xff]
    %v13 = vld [vmem:[%s0] sm:$0xff]
    %v14 = vld [vmem:[%s0 + $0x8] sm:$0xff]
    %v15 = vld [vmem:[%s0 + $0x10] sm:$0xff]
    %v16 = vld [vmem:[%s0 + $0x18] sm:$0xff]
    %v17 = vld [vmem:[%s0 + $0x20] sm:$0xff]
    %v18 = vld [vmem:[%s0 + $0x28] sm:$0xff]
    %v19 = vld [vmem:[%s0 + $0x30] sm:$0xff]
    %v20 = vld [vmem:[%s0 + $0x38] sm:$0xff]
    %vm21 = vcmask 261120
    %v23 = vsel %vm21, %v12, 0
    %v26 = vsel %vm21, %v13, 0
    %v29 = vsel %vm21, %v14, 0
    %v32 = vsel %vm21, %v15, 0
    %v35 = vsel %vm21, %v16, 0
    %v38 = vsel %vm21, %v17, 0
    %v41 = vsel %vm21, %v18, 0
    %v44 = vsel %vm21, %v19, 0
    %v47 = vsel %vm21, %v20, 0
    %49 = vmatpush.xpose.msra.mxu0 0.0
    %50 = vmatpush.xpose.msra.mxu0 0.0
    %51 = vmatpush.xpose.msra.mxu0 0.0
    %52 = vmatpush.xpose.msra.mxu0 0.0
    %53 = vmatpush.xpose.msra.mxu0 0.0
    %54 = vmatpush.xpose.msra.mxu0 0.0
    %55 = vmatpush.xpose.msra.mxu0 0.0
    %56 = vmatpush.xpose.msra.mxu0 0.0
    %57 = vmatpush.xpose.msra.mxu0 %v47
    %58 = vmatpush.xpose.msra.mxu0 %v44
    %59 = vmatpush.xpose.msra.mxu0 %v41
    %60 = vmatpush.xpose.msra.mxu0 %v38
    %61 = vmatpush.xpose.msra.mxu0 %v35
    %62 = vmatpush.xpose.msra.mxu0 %v32
    %63 = vmatpush.xpose.msra.mxu0 %v29
    %64 = vmatpush.xpose.msra.mxu0 %v26
    %65 = vmatmul.f32.gmra.mxu0 %v23
    %v66 = vpop.f32.mrf.mxu0
    %v67 = vadd.f32 0.0, %v66
    %68 = vdwg.mxu0
    %v69 = vmul.f32 %v67, 14.285714
    %v70 = vmul.f32 %v69, 1.442695
    %v71 = vpow.pop %v70
    %vm72 = vcmask 523264
    %73 = vst.msk [vmem:[#allocation2] sm:$0xff] %vm72, %v71
    // Predicated region
    $region10: #{tpu_custom_call.1} parent=1 // pred_check
      _
    $region11: #{tpu_custom_call.1} parent=1 // pred_check_branch
      %75 = sbr.rel (0) target = $region13
    $region12: #{tpu_custom_call.1} parent=1 // pred_region
      %77 = vsyncadd [#allocation3], 0
      %s79 = sshll.u32 [#allocation2], 4
      %s80 = int_to_ptr.vmem [resolvable:$true] %s79
      %s81 = sshll.u32 %s2, 4
      %s82 = int_to_ptr.hbm [resolvable:$true] %s81
      %84 = dma.vmem_to_hbm [thread:$0]  %s80, 128, %s82, [#allocation3]
    $region13: #{tpu_custom_call.1} parent=1 // pred_fallthru
      _
    // Predicated region
    $region14: #{tpu_custom_call.1} parent=1 // pred_check
      _
    $region15: #{tpu_custom_call.1} parent=1 // pred_check_branch
      %86 = sbr.rel (0) target = $region17
    $region16: #{tpu_custom_call.1} parent=1 // pred_region
      %88 = dma.done [#allocation3], 128
    $region17: #{tpu_custom_call.1} parent=1 // pred_fallthru
      _
    %89 = vsyncpa [#allocation3], 1

</llo_original>
